<compile_context>
chip_gen: v6e
topology: v6e:2x2x1
jax: 0.10.0
libtpu: 0.0.40
codegen_flags: <defaults>
</compile_context>

<pallas_src>
import jax
import jax.numpy as jnp
from jax import lax
from jax.experimental import pallas as pl
from jax.experimental.pallas import tpu as pltpu


def _round_up(x, m):
    return ((x + m - 1) // m) * m


def _choose_tile(dim, preferred, align):
    """Pick a tile size and the padded dim it divides exactly."""
    aligned = _round_up(dim, align)
    tile = preferred if aligned >= preferred else aligned
    padded = _round_up(aligned, tile)
    return tile, padded


def _stable_softplus(x):
    # log1p(exp(x)) without overflow for large x (trained rho can be large).
    return jnp.where(x > 20.0, x, jnp.log1p(jnp.exp(jnp.minimum(x, 20.0))))


# ---------------------------------------------------------------------------
# Kernels
# ---------------------------------------------------------------------------
def _vlin_sample_kernel(x_ref, wmu_ref, wrho_ref, weps_ref,
                        bmu_ref, brho_ref, beps_ref, o_ref, acc_ref):
    """Sampled path. Grid = (M//tm, N//tn, K//tk), K innermost (reduction)."""
    k = pl.program_id(2)

    @pl.when(k == 0)
    def _init():
        acc_ref[...] = jnp.zeros_like(acc_ref)

    # Reparameterize the [tn, tk] weight tile in VMEM (VPU + EUP work).
    w_sigma = _stable_softplus(wrho_ref[...])
    weight = wmu_ref[...] + w_sigma * weps_ref[...]            # [tn, tk]

    # x[tm, tk] contracted with weight[tn, tk] over K directly on the MXU;
    # avoids the XLU transpose that `weight.T` would force.
    acc_ref[...] += lax.dot_general(
        x_ref[...], weight,
        dimension_numbers=(((1,), (1,)), ((), ())),
        preferred_element_type=jnp.float32)                    # [tm, tn]

    @pl.when(k == pl.num_programs(2) - 1)
    def _finalize():
        b_sigma = _stable_softplus(brho_ref[...])
        bias = bmu_ref[...] + b_sigma * beps_ref[...]          # [1, tn]
        o_ref[...] = (acc_ref[...] + bias).astype(o_ref.dtype)


def _vlin_det_kernel(x_ref, wmu_ref, bmu_ref, o_ref, acc_ref):
    """sample=False path: plain x @ mu.T + bias_mu. No rho/eps traffic."""
    k = pl.program_id(2)

    @pl.when(k == 0)
    def _init():
        acc_ref[...] = jnp.zeros_like(acc_ref)

    acc_ref[...] += lax.dot_general(
        x_ref[...], wmu_ref[...],
        dimension_numbers=(((1,), (1,)), ((), ())),
        preferred_element_type=jnp.float32)

    @pl.when(k == pl.num_programs(2) - 1)
    def _finalize():
        o_ref[...] = (acc_ref[...] + bmu_ref[...]).astype(o_ref.dtype)


# ---------------------------------------------------------------------------
# Wrapper
# ---------------------------------------------------------------------------
def variational_linear(x, weight_mu, weight_rho, bias_mu, bias_rho,
                       key=None, sample=True,
                       tm_pref=256, tn_pref=256, tk_pref=512):
    """Pallas-backed forward of VariationalLinear.

    x:          [batch, in_features]  float32
    weight_mu:  [out_features, in_features]
    weight_rho: [out_features, in_features]
    bias_mu:    [out_features]
    bias_rho:   [out_features]
    """
    batch, in_features = x.shape
    out_features = weight_mu.shape[0]

    # Tile sizing: lane-dense N/K (multiples of 128), sublane-aligned M.
    tm, Mp = _choose_tile(batch, tm_pref, 8)
    tn, Np = _choose_tile(out_features, tn_pref, 128)
    tk, Kp = _choose_tile(in_features, tk_pref, 128)

    def pad2(a, rows, cols):
        return jnp.pad(a, ((0, rows - a.shape[0]), (0, cols - a.shape[1])))

    xp = pad2(x.astype(jnp.float32), Mp, Kp)
    wmu = pad2(weight_mu.astype(jnp.float32), Np, Kp)
    bmu = pad2(bias_mu.reshape(1, out_features).astype(jnp.float32), 1, Np)

    grid = (Mp // tm, Np // tn, Kp // tk)

    x_spec = pl.BlockSpec((tm, tk), lambda i, j, k: (i, k))
    w_spec = pl.BlockSpec((tn, tk), lambda i, j, k: (j, k))
    b_spec = pl.BlockSpec((1, tn), lambda i, j, k: (0, j))
    o_spec = pl.BlockSpec((tm, tn), lambda i, j, k: (i, j))

    compiler_params = pltpu.CompilerParams(
        dimension_semantics=("parallel", "parallel", "arbitrary"),
        vmem_limit_bytes=48 * 1024 * 1024)

    out_shape = jax.ShapeDtypeStruct((Mp, Np), jnp.float32)
    scratch = [pltpu.VMEM((tm, tn), jnp.float32)]

    if sample:
        if key is None:
            raise ValueError("key is required when sample=True")
        kw, kb = jax.random.split(key)
        # Matches torch.randn_like sampling semantics (drawn in the wrapper so
        # the kernel output is bitwise-checkable against a plain-JAX reference).
        # TODO(synk): generate eps in-kernel (pltpu.prng_seed/prng_random_bits +
        # Box-Muller) to drop the weight-sized eps HBM stream (~1/3 of input
        # bytes); it would change the exact draws vs jax.random.normal.
        weight_eps = jax.random.normal(kw, (out_features, in_features),
                                       dtype=jnp.float32)
        bias_eps = jax.random.normal(kb, (out_features,), dtype=jnp.float32)

        wrho = pad2(weight_rho.astype(jnp.float32), Np, Kp)
        weps = pad2(weight_eps, Np, Kp)
        brho = pad2(bias_rho.reshape(1, out_features).astype(jnp.float32), 1, Np)
        beps = pad2(bias_eps.reshape(1, out_features), 1, Np)

        yp = pl.pallas_call(
            _vlin_sample_kernel,
            out_shape=out_shape,
            grid_spec=pltpu.PrefetchScalarGridSpec(
                num_scalar_prefetch=0,
                grid=grid,
                in_specs=[x_spec, w_spec, w_spec, w_spec,
                          b_spec, b_spec, b_spec],
                out_specs=o_spec,
                scratch_shapes=scratch),
            compiler_params=compiler_params,
        )(xp, wmu, wrho, weps, bmu, brho, beps)
    else:
        # Deterministic path: no rho/eps DMA, no softplus compute at all.
        yp = pl.pallas_call(
            _vlin_det_kernel,
            out_shape=out_shape,
            grid_spec=pltpu.PrefetchScalarGridSpec(
                num_scalar_prefetch=0,
                grid=grid,
                in_specs=[x_spec, w_spec, b_spec],
                out_specs=o_spec,
                scratch_shapes=scratch),
            compiler_params=compiler_params,
        )(xp, wmu, bmu)

    return yp[:batch, :out_features]


def init_params(key, in_features, out_features):
    """Matches reset_parameters(): xavier_normal weight_mu, rho = -5, bias = 0."""
    xavier_std = jnp.sqrt(2.0 / (in_features + out_features))
    weight_mu = xavier_std * jax.random.normal(
        key, (out_features, in_features), dtype=jnp.float32)
    weight_rho = jnp.full((out_features, in_features), -5.0, dtype=jnp.float32)
    bias_mu = jnp.zeros((out_features,), dtype=jnp.float32)
    bias_rho = jnp.full((out_features,), -5.0, dtype=jnp.float32)
    return weight_mu, weight_rho, bias_mu, bias_rho


if __name__ == "__main__":
    in_features = 32
    out_features = 64
    batch = 8

    root = jax.random.PRNGKey(0)
    k_param, k_x, k_eps = jax.random.split(root, 3)

    weight_mu, weight_rho, bias_mu, bias_rho = init_params(
        k_param, in_features, out_features)
    x = jax.random.normal(k_x, (batch, in_features), dtype=jnp.float32)

    # --- sampled (reparameterized) path -----------------------------------
    y = variational_linear(x, weight_mu, weight_rho, bias_mu, bias_rho,
                           k_eps, sample=True)
    y = jax.block_until_ready(y)

    # Plain-JAX reference with the same epsilon draw.
    kw, kb = jax.random.split(k_eps)
    w_eps = jax.random.normal(kw, (out_features, in_features), dtype=jnp.float32)
    b_eps = jax.random.normal(kb, (out_features,), dtype=jnp.float32)
    w_sigma = jnp.where(weight_rho > 20.0, weight_rho,
                        jnp.log1p(jnp.exp(jnp.minimum(weight_rho, 20.0))))
    b_sigma = jnp.where(bias_rho > 20.0, bias_rho,
                        jnp.log1p(jnp.exp(jnp.minimum(bias_rho, 20.0))))
    w = weight_mu + w_sigma * w_eps
    b = bias_mu + b_sigma * b_eps
    y_ref = x @ w.T + b
    assert y.shape == (batch, out_features)
    assert jnp.allclose(y, y_ref, atol=1e-4, rtol=1e-5)

    # --- deterministic (sample=False) path ---------------------------------
    y_det = variational_linear(x, weight_mu, weight_rho, bias_mu, bias_rho,
                               sample=False)
    y_det = jax.block_until_ready(y_det)
    assert jnp.allclose(y_det, x @ weight_mu.T + bias_mu, atol=1e-4, rtol=1e-5)

    # --- numerically stable softplus sanity check (large rho stays finite) --
    big_rho = jnp.full_like(weight_rho, 100.0)
    big_brho = jnp.full_like(bias_rho, 100.0)
    y_big = variational_linear(x, weight_mu, big_rho, bias_mu, big_brho,
                               k_eps, sample=True)
    y_big = jax.block_until_ready(y_big)
    assert bool(jnp.all(jnp.isfinite(y_big)))

    print("KERNEL_OK")
</pallas_src>

<mosaic_0001>
module attributes {stable_mosaic.version = 11 : i64} {
  func.func @_vlin_sample_kernel(%arg0: i32, %arg1: i32, %arg2: i32, %arg3: memref<8x128xf32, #tpu.memory_space<vmem>>, %arg4: memref<128x128xf32, #tpu.memory_space<vmem>>, %arg5: memref<128x128xf32, #tpu.memory_space<vmem>>, %arg6: memref<128x128xf32, #tpu.memory_space<vmem>>, %arg7: memref<1x128xf32, #tpu.memory_space<vmem>>, %arg8: memref<1x128xf32, #tpu.memory_space<vmem>>, %arg9: memref<1x128xf32, #tpu.memory_space<vmem>>, %arg10: memref<8x128xf32, #tpu.memory_space<vmem>>, %arg11: memref<8x128xf32, #tpu.memory_space<vmem>>) attributes {dimension_semantics = [#tpu.dimension_semantics<parallel>, #tpu.dimension_semantics<parallel>, #tpu.dimension_semantics<arbitrary>], iteration_bounds = array<i64: 1, 1, 1>, scalar_prefetch = 0 : i64, scratch_operands = 1 : i64, tpu.core_type = #tpu.core_type<tc>, window_params = [{transform_indices = @transform_0, window_bounds = array<i64: 8, 128>}, {transform_indices = @transform_1, window_bounds = array<i64: 128, 128>}, {transform_indices = @transform_2, window_bounds = array<i64: 128, 128>}, {transform_indices = @transform_3, window_bounds = array<i64: 128, 128>}, {transform_indices = @transform_4, window_bounds = array<i64: 1, 128>}, {transform_indices = @transform_5, window_bounds = array<i64: 1, 128>}, {transform_indices = @transform_6, window_bounds = array<i64: 1, 128>}, {transform_indices = @transform_7, window_bounds = array<i64: 8, 128>}]} {
    %c0_i32 = arith.constant 0 : i32
    %0 = arith.cmpi eq, %arg2, %c0_i32 : i32
    %1 = arith.extui %0 : i1 to i32
    %c0_i32_0 = arith.constant 0 : i32
    %2 = arith.cmpi ne, %1, %c0_i32_0 : i32
    scf.if %2 {
      %cst_16 = arith.constant 0.000000e+00 : f32
      %23 = vector.broadcast %cst_16 : f32 to vector<8x128xf32>
      %c0_17 = arith.constant 0 : index
      %c0_18 = arith.constant 0 : index
      %24 = vector.load %arg11[%c0_17, %c0_18] : memref<8x128xf32, #tpu.memory_space<vmem>>, vector<8x128xf32>
      tpu.vector_store %arg11[%c0_17, %c0_18], %23 {strides = array<i32>} : memref<8x128xf32, #tpu.memory_space<vmem>>, vector<8x128xf32>,
    } else {
    }
    %c0 = arith.constant 0 : index
    %c0_1 = arith.constant 0 : index
    %3 = vector.load %arg5[%c0, %c0_1] : memref<128x128xf32, #tpu.memory_space<vmem>>, vector<128x128xf32>
    %cst = arith.constant 2.000000e+01 : f32
    %4 = vector.broadcast %cst : f32 to vector<128x128xf32>
    %5 = arith.cmpf ogt, %3, %4 : vector<128x128xf32>
    %cst_2 = arith.constant 2.000000e+01 : f32
    %6 = vector.broadcast %cst_2 : f32 to vector<128x128xf32>
    %7 = arith.minimumf %3, %6 : vector<128x128xf32>
    %8 = math.exp %7 : vector<128x128xf32>
    %9 = math.log1p %8 : vector<128x128xf32>
    %10 = arith.select %5, %3, %9 : vector<128x128xi1>, vector<128x128xf32>
    %c0_3 = arith.constant 0 : index
    %c0_4 = arith.constant 0 : index
    %11 = vector.load %arg4[%c0_3, %c0_4] : memref<128x128xf32, #tpu.memory_space<vmem>>, vector<128x128xf32>
    %c0_5 = arith.constant 0 : index
    %c0_6 = arith.constant 0 : index
    %12 = vector.load %arg6[%c0_5, %c0_6] : memref<128x128xf32, #tpu.memory_space<vmem>>, vector<128x128xf32>
    %13 = arith.mulf %10, %12 : vector<128x128xf32>
    %14 = arith.addf %11, %13 : vector<128x128xf32>
    %c0_7 = arith.constant 0 : index
    %c0_8 = arith.constant 0 : index
    %15 = vector.load %arg11[%c0_7, %c0_8] : memref<8x128xf32, #tpu.memory_space<vmem>>, vector<8x128xf32>
    %c0_9 = arith.constant 0 : index
    %c0_10 = arith.constant 0 : index
    %16 = vector.load %arg3[%c0_9, %c0_10] : memref<8x128xf32, #tpu.memory_space<vmem>>, vector<8x128xf32>
    %cst_11 = arith.constant dense<0.000000e+00> : vector<8x128xf32>
    %17 = tpu.matmul %16, %14, %cst_11 {dimension_numbers = #tpu.dot_dimension_numbers<[1], [1], [0], [0], [0, 0, 1, 0], [], []>} : vector<8x128xf32>, vector<128x128xf32>, vector<8x128xf32> -> vector<8x128xf32>
    %18 = arith.addf %15, %17 : vector<8x128xf32>
    %c0_12 = arith.constant 0 : index
    %c0_13 = arith.constant 0 : index
    %19 = vector.load %arg11[%c0_12, %c0_13] : memref<8x128xf32, #tpu.memory_space<vmem>>, vector<8x128xf32>
    tpu.vector_store %arg11[%c0_12, %c0_13], %18 {strides = array<i32>} : memref<8x128xf32, #tpu.memory_space<vmem>>, vector<8x128xf32>,
    %c0_i32_14 = arith.constant 0 : i32
    %20 = arith.cmpi eq, %arg2, %c0_i32_14 : i32
    %21 = arith.extui %20 : i1 to i32
    %c0_i32_15 = arith.constant 0 : i32
    %22 = arith.cmpi ne, %21, %c0_i32_15 : i32
    scf.if %22 {
      %c0_16 = arith.constant 0 : index
      %c0_17 = arith.constant 0 : index
      %23 = vector.load %arg8[%c0_16, %c0_17] : memref<1x128xf32, #tpu.memory_space<vmem>>, vector<1x128xf32>
      %cst_18 = arith.constant 2.000000e+01 : f32
      %24 = vector.broadcast %cst_18 : f32 to vector<1x128xf32>
      %25 = arith.cmpf ogt, %23, %24 : vector<1x128xf32>
      %cst_19 = arith.constant 2.000000e+01 : f32
      %26 = vector.broadcast %cst_19 : f32 to vector<1x128xf32>
      %27 = arith.minimumf %23, %26 : vector<1x128xf32>
      %28 = math.exp %27 : vector<1x128xf32>
      %29 = math.log1p %28 : vector<1x128xf32>
      %30 = arith.select %25, %23, %29 : vector<1x128xi1>, vector<1x128xf32>
      %c0_20 = arith.constant 0 : index
      %c0_21 = arith.constant 0 : index
      %31 = vector.load %arg7[%c0_20, %c0_21] : memref<1x128xf32, #tpu.memory_space<vmem>>, vector<1x128xf32>
      %c0_22 = arith.constant 0 : index
      %c0_23 = arith.constant 0 : index
      %32 = vector.load %arg9[%c0_22, %c0_23] : memref<1x128xf32, #tpu.memory_space<vmem>>, vector<1x128xf32>
      %33 = arith.mulf %30, %32 : vector<1x128xf32>
      %34 = arith.addf %31, %33 : vector<1x128xf32>
      %c0_24 = arith.constant 0 : index
      %c0_25 = arith.constant 0 : index
      %35 = vector.load %arg11[%c0_24, %c0_25] : memref<8x128xf32, #tpu.memory_space<vmem>>, vector<8x128xf32>
      %36 = vector.broadcast %34 : vector<1x128xf32> to vector<8x128xf32>
      %37 = arith.addf %35, %36 : vector<8x128xf32>
      %c0_26 = arith.constant 0 : index
      %c0_27 = arith.constant 0 : index
      %38 = vector.load %arg10[%c0_26, %c0_27] : memref<8x128xf32, #tpu.memory_space<vmem>>, vector<8x128xf32>
      tpu.vector_store %arg10[%c0_26, %c0_27], %37 {strides = array<i32>} : memref<8x128xf32, #tpu.memory_space<vmem>>, vector<8x128xf32>,
    } else {
    }
    return
  }
  func.func @transform_0(%arg0: i32, %arg1: i32, %arg2: i32) -> (i32, i32) {
    %c0_i32 = arith.constant 0 : i32
    return %arg0, %arg2 : i32, i32
  }
  func.func @transform_1(%arg0: i32, %arg1: i32, %arg2: i32) -> (i32, i32) {
    %c0_i32 = arith.constant 0 : i32
    return %arg1, %arg2 : i32, i32
  }
  func.func @transform_2(%arg0: i32, %arg1: i32, %arg2: i32) -> (i32, i32) {
    %c0_i32 = arith.constant 0 : i32
    return %arg1, %arg2 : i32, i32
  }
  func.func @transform_3(%arg0: i32, %arg1: i32, %arg2: i32) -> (i32, i32) {
    %c0_i32 = arith.constant 0 : i32
    return %arg1, %arg2 : i32, i32
  }
  func.func @transform_4(%arg0: i32, %arg1: i32, %arg2: i32) -> (i32, i32) {
    %c0_i32 = arith.constant 0 : i32
    %c0_i32_0 = arith.constant 0 : i32
    return %c0_i32, %arg1 : i32, i32
  }
  func.func @transform_5(%arg0: i32, %arg1: i32, %arg2: i32) -> (i32, i32) {
    %c0_i32 = arith.constant 0 : i32
    %c0_i32_0 = arith.constant 0 : i32
    return %c0_i32, %arg1 : i32, i32
  }
  func.func @transform_6(%arg0: i32, %arg1: i32, %arg2: i32) -> (i32, i32) {
    %c0_i32 = arith.constant 0 : i32
    %c0_i32_0 = arith.constant 0 : i32
    return %c0_i32, %arg1 : i32, i32
  }
  func.func @transform_7(%arg0: i32, %arg1: i32, %arg2: i32) -> (i32, i32) {
    %c0_i32 = arith.constant 0 : i32
    return %arg0, %arg1 : i32, i32
  }
}

</mosaic_0001>

<llo_original>
// kernel: tpu_custom_call.1
$region0: #{tpu_custom_call.1}
  #allocation0 [shape = 'u32[]', space=smem, size = 0x4, offset = 0x4, fixed_abs, tag = 'smem constant byte address 0x4 - core index']
  #allocation1 [shape = 'u32[144,128]{1,0:T(1,128)}', space=vmem, size = 0x12000, scoped, tag = 'internal scratch']
  #allocation2 [shape = 'f32[8,128]{1,0:T(8,128)}', space=vmem, size = 0x1000, scoped, tag = 'scratch operand']
  %s0 = inlined_call_operand.hbm [shape: f32[8,128], index: 0, kind: input, shape index: {}]
  %s1 = inlined_call_operand.hbm [shape: f32[128,128], index: 1, kind: input, shape index: {}]
  %s2 = inlined_call_operand.hbm [shape: f32[128,128], index: 2, kind: input, shape index: {}]
  %s3 = inlined_call_operand.hbm [shape: f32[128,128], index: 3, kind: input, shape index: {}]
  %s4 = inlined_call_operand.vmem [shape: f32[1,128], index: 4, kind: input, shape index: {}]
  %s5 = inlined_call_operand.vmem [shape: f32[1,128], index: 5, kind: input, shape index: {}]
  %s6 = inlined_call_operand.vmem [shape: f32[1,128], index: 6, kind: input, shape index: {}]
  %s7 = inlined_call_operand.hbm [shape: f32[8,128], index: 7, kind: output, shape index: {}]
  %s8 = sld [smem:[#allocation0]]
  $region62: #{tpu_custom_call.1} parent=0
    _
  %s10 = ssub.s32 1, %s8
  %s11 = scalar_select 0, %s10, %s8
  $region1: #{tpu_custom_call.1} parent=0
    #allocation3 [shape = 'u8[4096]{0}', space=vmem, size = 0x1000, scoped, tag = 'input window, operand 0, single buffered']
    #allocation4 [shape = 's32[1]{0}', space=sflag, size = 0x4, scoped, tag = 'scoped memory for tpu_custom_call.1']
    #allocation5 [shape = 's32[1]{0}', space=sflag, size = 0x4, scoped, tag = 'scoped memory for tpu_custom_call.1']
    #allocation6 [shape = 'u8[65536]{0}', space=vmem, size = 0x10000, scoped, tag = 'input window, operand 1, single buffered']
    #allocation7 [shape = 's32[1]{0}', space=sflag, size = 0x4, scoped, tag = 'scoped memory for tpu_custom_call.1']
    #allocation8 [shape = 'u8[65536]{0}', space=vmem, size = 0x10000, scoped, tag = 'input window, operand 2, single buffered']
    #allocation9 [shape = 'u8[65536]{0}', space=vmem, size = 0x10000, scoped, tag = 'input window, operand 3, single buffered']
    #allocation10 [shape = 's32[1]{0}', space=sflag, size = 0x4, scoped, tag = 'scoped memory for tpu_custom_call.1']
    #allocation11 [shape = 'u8[4096]{0}', space=vmem, size = 0x1000, scoped, tag = 'output window, operand 0, single buffered']
    %12 = vsyncpa [#allocation4], 0
    %13 = vsyncpa [#allocation7], 0
    %14 = vsyncpa [#allocation10], 0
    %15 = vsyncpa [#allocation5], 0
    // Predicated region
    $region2: #{tpu_custom_call.1} parent=1 // pred_check
      _
    $region3: #{tpu_custom_call.1} parent=1 // pred_check_branch
      %17 = sbr.rel (0) target = $region5
    $region4: #{tpu_custom_call.1} parent=1 // pred_region
      %s19 = ssub.s32 128, 128
      %20 = vsyncadd [#allocation4], %s19
      %s22 = sshll.u32 [#allocation3], 4
      %s23 = int_to_ptr.vmem [resolvable:$true] %s22
      %25 = dma.hbm_to_vmem [thread:$0]  %s0, 128, %s23, [#allocation4]
    $region5: #{tpu_custom_call.1} parent=1 // pred_fallthru
      _
    // Predicated region
    $region6: #{tpu_custom_call.1} parent=1 // pred_check
      _
    $region7: #{tpu_custom_call.1} parent=1 // pred_check_branch
      %27 = sbr.rel (0) target = $region9
    $region8: #{tpu_custom_call.1} parent=1 // pred_region
      %s29 = ssub.s32 2048, 2048
      %30 = vsyncadd [#allocation7], %s29
      %s31 = sshll.u32 [#allocation6], 4
      %s32 = int_to_ptr.vmem [resolvable:$true] %s31
      %37 = dma.hbm_to_vmem [thread:$0]  %s1, 2048, %s32, [#allocation7], 128, 128, 8
    $region9: #{tpu_custom_call.1} parent=1 // pred_fallthru
      _
    // Predicated region
    $region10: #{tpu_custom_call.1} parent=1 // pred_check
      _
    $region11: #{tpu_custom_call.1} parent=1 // pred_check_branch
      %39 = sbr.rel (0) target = $region13
    $region12: #{tpu_custom_call.1} parent=1 // pred_region
      %s41 = ssub.s32 2048, 2048
      %42 = vsyncadd [#allocation7], %s41
      %s43 = sshll.u32 [#allocation8], 4
      %s44 = int_to_ptr.vmem [resolvable:$true] %s43
      %49 = dma.hbm_to_vmem [thread:$0]  %s2, 2048, %s44, [#allocation7], 128, 128, 8
    $region13: #{tpu_custom_call.1} parent=1 // pred_fallthru
      _
    // Predicated region
    $region14: #{tpu_custom_call.1} parent=1 // pred_check
      _
    $region15: #{tpu_custom_call.1} parent=1 // pred_check_branch
      %51 = sbr.rel (0) target = $region17
    $region16: #{tpu_custom_call.1} parent=1 // pred_region
      %s53 = ssub.s32 2048, 2048
      %54 = vsyncadd [#allocation10], %s53
      %s55 = sshll.u32 [#allocation9], 4
      %s56 = int_to_ptr.vmem [resolvable:$true] %s55
      %61 = dma.hbm_to_vmem [thread:$0]  %s3, 2048, %s56, [#allocation10], 128, 128, 8
    $region17: #{tpu_custom_call.1} parent=1 // pred_fallthru
      _
    // Predicated region
    $region18: #{tpu_custom_call.1} parent=1 // pred_check
      _
    $region19: #{tpu_custom_call.1} parent=1 // pred_check_branch
      %63 = sbr.rel (0) target = $region21
    $region20: #{tpu_custom_call.1} parent=1 // pred_region
      _
    $region21: #{tpu_custom_call.1} parent=1 // pred_fallthru
      _
    // Predicated region
    $region22: #{tpu_custom_call.1} parent=1 // pred_check
      _
    $region23: #{tpu_custom_call.1} parent=1 // pred_check_branch
      %65 = sbr.rel (0) target = $region25
    $region24: #{tpu_custom_call.1} parent=1 // pred_region
      _
    $region25: #{tpu_custom_call.1} parent=1 // pred_fallthru
      _
    // Predicated region
    $region26: #{tpu_custom_call.1} parent=1 // pred_check
      _
    $region27: #{tpu_custom_call.1} parent=1 // pred_check_branch
      %67 = sbr.rel (0) target = $region29
    $region28: #{tpu_custom_call.1} parent=1 // pred_region
      _
    $region29: #{tpu_custom_call.1} parent=1 // pred_fallthru
      _
    // Predicated region
    $region30: #{tpu_custom_call.1} parent=1 // pred_check
      _
    $region31: #{tpu_custom_call.1} parent=1 // pred_check_branch
      %69 = sbr.rel (0) target = $region33
    $region32: #{tpu_custom_call.1} parent=1 // pred_region
      %70 = dma.done [#allocation4], 128
    $region33: #{tpu_custom_call.1} parent=1 // pred_fallthru
      _
    // Predicated region
    $region34: #{tpu_custom_call.1} parent=1 // pred_check
      _
    $region35: #{tpu_custom_call.1} parent=1 // pred_check_branch
      %72 = sbr.rel (0) target = $region37
    $region36: #{tpu_custom_call.1} parent=1 // pred_region
      %73 = dma.done [#allocation7], 2048
    $region37: #{tpu_custom_call.1} parent=1 // pred_fallthru
      _
    // Predicated region
    $region38: #{tpu_custom_call.1} parent=1 // pred_check
      _
    $region39: #{tpu_custom_call.1} parent=1 // pred_check_branch
      %75 = sbr.rel (0) target = $region41
    $region40: #{tpu_custom_call.1} parent=1 // pred_region
      %76 = dma.done [#allocation7], 2048
    $region41: #{tpu_custom_call.1} parent=1 // pred_fallthru
      _
    // Predicated region
    $region42: #{tpu_custom_call.1} parent=1 // pred_check
      _
    $region43: #{tpu_custom_call.1} parent=1 // pred_check_branch
      %78 = sbr.rel (0) target = $region45
    $region44: #{tpu_custom_call.1} parent=1 // pred_region
      %79 = dma.done [#allocation10], 2048
    $region45: #{tpu_custom_call.1} parent=1 // pred_fallthru
      _
    %p80 = scmp.eq.s32.totalorder 0, 0
    // Predicated region
    $region46: #{tpu_custom_call.1} parent=1 // pred_check
      %p81 = pneg %p80
    $region47: #{tpu_custom_call.1} parent=1 // pred_check_branch
      %83 = sbr.rel (%p81) target = $region49
    $region48: #{tpu_custom_call.1} parent=1 // pred_region
      %84 = vst [vmem:[#allocation2] sm:$0xff] 0.0
    $region49: #{tpu_custom_call.1} parent=1 // pred_fallthru
      _
    %v85 = vld [vmem:[#allocation8] sm:$0xff]
    %v86 = vld [vmem:[#allocation8 + $0x8] sm:$0xff]
    %v87 = vld [vmem:[#allocation8 + $0x10] sm:$0xff]
    %v88 = vld [vmem:[#allocation8 + $0x18] sm:$0xff]
    %v89 = vld [vmem:[#allocation8 + $0x20] sm:$0xff]
    %v90 = vld [vmem:[#allocation8 + $0x28] sm:$0xff]
    %v91 = vld [vmem:[#allocation8 + $0x30] sm:$0xff]
    %v92 = vld [vmem:[#allocation8 + $0x38] sm:$0xff]
    %v93 = vld [vmem:[#allocation8 + $0x40] sm:$0xff]
    %v94 = vld [vmem:[#allocation8 + $0x48] sm:$0xff]
    %v95 = vld [vmem:[#allocation8 + $0x50] sm:$0xff]
    %v96 = vld [vmem:[#allocation8 + $0x58] sm:$0xff]
    %v97 = vld [vmem:[#allocation8 + $0x60] sm:$0xff]
    %v98 = vld [vmem:[#allocation8 + $0x68] sm:$0xff]
    %v99 = vld [vmem:[#allocation8 + $0x70] sm:$0xff]
    %v100 = vld [vmem:[#allocation8 + $0x78] sm:$0xff]
    %vm101 = vcmp.gt.f32.partialorder %v85, 20.0
    %vm102 = vcmp.gt.f32.partialorder %v86, 20.0
    %vm103 = vcmp.gt.f32.partialorder %v87, 20.0
    %vm104 = vcmp.gt.f32.partialorder %v88, 20.0
    %vm105 = vcmp.gt.f32.partialorder %v89, 20.0
    %vm106 = vcmp.gt.f32.partialorder %v90, 20.0
    %vm107 = vcmp.gt.f32.partialorder %v91, 20.0
    %vm108 = vcmp.gt.f32.partialorder %v92, 20.0
    %vm109 = vcmp.gt.f32.partialorder %v93, 20.0
    %vm110 = vcmp.gt.f32.partialorder %v94, 20.0
    %vm111 = vcmp.gt.f32.partialorder %v95, 20.0
    %vm112 = vcmp.gt.f32.partialorder %v96, 20.0
    %vm113 = vcmp.gt.f32.partialorder %v97, 20.0
    %vm114 = vcmp.gt.f32.partialorder %v98, 20.0
    %vm115 = vcmp.gt.f32.partialorder %v99, 20.0
    %vm116 = vcmp.gt.f32.partialorder %v100, 20.0
    %v117 = vmin.f32 %v85, 20.0
    %v118 = vmin.f32 %v86, 20.0
    %v119 = vmin.f32 %v87, 20.0
    %v120 = vmin.f32 %v88, 20.0
    %v121 = vmin.f32 %v89, 20.0
    %v122 = vmin.f32 %v90, 20.0
    %v123 = vmin.f32 %v91, 20.0
    %v124 = vmin.f32 %v92, 20.0
    %v125 = vmin.f32 %v93, 20.0
    %v126 = vmin.f32 %v94, 20.0
    %v127 = vmin.f32 %v95, 20.0
    %v128 = vmin.f32 %v96, 20.0
    %v129 = vmin.f32 %v97, 20.0
    %v130 = vmin.f32 %v98, 20.0
    %v131 = vmin.f32 %v99, 20.0
    %v132 = vmin.f32 %v100, 20.0
    %v133 = vmul.f32 %v117, 1.442695
    %v134 = vpow.pop %v133
    %v135 = vmul.f32 %v118, 1.442695
    %v136 = vpow.pop %v135
    %v137 = vmul.f32 %v119, 1.442695
    %v138 = vpow.pop %v137
    %v139 = vmul.f32 %v120, 1.442695
    %v140 = vpow.pop %v139
    %v141 = vmul.f32 %v121, 1.442695
    %v142 = vpow.pop %v141
    %v143 = vmul.f32 %v122, 1.442695
    %v144 = vpow.pop %v143
    %v145 = vmul.f32 %v123, 1.442695
    %v146 = vpow.pop %v145
    %v147 = vmul.f32 %v124, 1.442695
    %v148 = vpow.pop %v147
    %v149 = vmul.f32 %v125, 1.442695
    %v150 = vpow.pop %v149
    %v151 = vmul.f32 %v126, 1.442695
    %v152 = vpow.pop %v151
    %v153 = vmul.f32 %v127, 1.442695
    %v154 = vpow.pop %v153
    %v155 = vmul.f32 %v128, 1.442695
    %v156 = vpow.pop %v155
    %v157 = vmul.f32 %v129, 1.442695
    %v158 = vpow.pop %v157
    %v159 = vmul.f32 %v130, 1.442695
    %v160 = vpow.pop %v159
    %v161 = vmul.f32 %v131, 1.442695
    %v162 = vpow.pop %v161
    %v163 = vmul.f32 %v132, 1.442695
    %v164 = vpow.pop %v163
    %v165 = vadd.f32 %v134, 1.0
    %v166 = vlog2.pop %v165
    %v167 = vmul.f32 %v166, 0.6931472
    %v168 = vmul.f32 -0.5, %v134
    %v169 = vadd.f32 %v168, 1.0
    %v170 = vmul.f32 %v169, %v134
    %v171 = vand.u32 2147483647, %v134
    %vm172 = vcmp.lt.f32.partialorder %v171, 0.0004427343
    %v173 = vsel %vm172, %v170, %v167
    %v174 = vadd.f32 %v136, 1.0
    %v175 = vlog2.pop %v174
    %v176 = vmul.f32 %v175, 0.6931472
    %v177 = vmul.f32 -0.5, %v136
    %v178 = vadd.f32 %v177, 1.0
    %v179 = vmul.f32 %v178, %v136
    %v180 = vand.u32 2147483647, %v136
    %vm181 = vcmp.lt.f32.partialorder %v180, 0.0004427343
    %v182 = vsel %vm181, %v179, %v176
    %v183 = vadd.f32 %v138, 1.0
    %v184 = vlog2.pop %v183
    %v185 = vmul.f32 %v184, 0.6931472
    %v186 = vmul.f32 -0.5, %v138
    %v187 = vadd.f32 %v186, 1.0
    %v188 = vmul.f32 %v187, %v138
    %v189 = vand.u32 2147483647, %v138
    %vm190 = vcmp.lt.f32.partialorder %v189, 0.0004427343
    %v191 = vsel %vm190, %v188, %v185
    %v192 = vadd.f32 %v140, 1.0
    %v193 = vlog2.pop %v192
    %v194 = vmul.f32 %v193, 0.6931472
    %v195 = vmul.f32 -0.5, %v140
    %v196 = vadd.f32 %v195, 1.0
    %v197 = vmul.f32 %v196, %v140
    %v198 = vand.u32 2147483647, %v140
    %vm199 = vcmp.lt.f32.partialorder %v198, 0.0004427343
    %v200 = vsel %vm199, %v197, %v194
    %v201 = vadd.f32 %v142, 1.0
    %v202 = vlog2.pop %v201
    %v203 = vmul.f32 %v202, 0.6931472
    %v204 = vmul.f32 -0.5, %v142
    %v205 = vadd.f32 %v204, 1.0
    %v206 = vmul.f32 %v205, %v142
    %v207 = vand.u32 2147483647, %v142
    %vm208 = vcmp.lt.f32.partialorder %v207, 0.0004427343
    %v209 = vsel %vm208, %v206, %v203
    %v210 = vadd.f32 %v144, 1.0
    %v211 = vlog2.pop %v210
    %v212 = vmul.f32 %v211, 0.6931472
    %v213 = vmul.f32 -0.5, %v144
    %v214 = vadd.f32 %v213, 1.0
    %v215 = vmul.f32 %v214, %v144
    %v216 = vand.u32 2147483647, %v144
    %vm217 = vcmp.lt.f32.partialorder %v216, 0.0004427343
    %v218 = vsel %vm217, %v215, %v212
    %v219 = vadd.f32 %v146, 1.0
    %v220 = vlog2.pop %v219
    %v221 = vmul.f32 %v220, 0.6931472
    %v222 = vmul.f32 -0.5, %v146
    %v223 = vadd.f32 %v222, 1.0
    %v224 = vmul.f32 %v223, %v146
    %v225 = vand.u32 2147483647, %v146
    %vm226 = vcmp.lt.f32.partialorder %v225, 0.0004427343
    %v227 = vsel %vm226, %v224, %v221
    %v228 = vadd.f32 %v148, 1.0
    %v229 = vlog2.pop %v228
    %v230 = vmul.f32 %v229, 0.6931472
    %v231 = vmul.f32 -0.5, %v148
    %v232 = vadd.f32 %v231, 1.0
    %v233 = vmul.f32 %v232, %v148
    %v234 = vand.u32 2147483647, %v148
    %vm235 = vcmp.lt.f32.partialorder %v234, 0.0004427343
    %v236 = vsel %vm235, %v233, %v230
    %v237 = vadd.f32 %v150, 1.0
    %v238 = vlog2.pop %v237
    %v239 = vmul.f32 %v238, 0.6931472
    %v240 = vmul.f32 -0.5, %v150
    %v241 = vadd.f32 %v240, 1.0
    %v242 = vmul.f32 %v241, %v150
    %v243 = vand.u32 2147483647, %v150
    %vm244 = vcmp.lt.f32.partialorder %v243, 0.0004427343
    %v245 = vsel %vm244, %v242, %v239
    %v246 = vadd.f32 %v152, 1.0
    %v247 = vlog2.pop %v246
    %v248 = vmul.f32 %v247, 0.6931472
    %v249 = vmul.f32 -0.5, %v152
    %v250 = vadd.f32 %v249, 1.0
    %v251 = vmul.f32 %v250, %v152
    %v252 = vand.u32 2147483647, %v152
    %vm253 = vcmp.lt.f32.partialorder %v252, 0.0004427343
    %v254 = vsel %vm253, %v251, %v248
    %v255 = vadd.f32 %v154, 1.0
    %v256 = vlog2.pop %v255
    %v257 = vmul.f32 %v256, 0.6931472
    %v258 = vmul.f32 -0.5, %v154
    %v259 = vadd.f32 %v258, 1.0
    %v260 = vmul.f32 %v259, %v154
    %v261 = vand.u32 2147483647, %v154
    %vm262 = vcmp.lt.f32.partialorder %v261, 0.0004427343
    %v263 = vsel %vm262, %v260, %v257
    %v264 = vadd.f32 %v156, 1.0
    %v265 = vlog2.pop %v264
    %v266 = vmul.f32 %v265, 0.6931472
    %v267 = vmul.f32 -0.5, %v156
    %v268 = vadd.f32 %v267, 1.0
    %v269 = vmul.f32 %v268, %v156
    %v270 = vand.u32 2147483647, %v156
    %vm271 = vcmp.lt.f32.partialorder %v270, 0.0004427343
    %v272 = vsel %vm271, %v269, %v266
    %v273 = vadd.f32 %v158, 1.0
    %v274 = vlog2.pop %v273
    %v275 = vmul.f32 %v274, 0.6931472
    %v276 = vmul.f32 -0.5, %v158
    %v277 = vadd.f32 %v276, 1.0
    %v278 = vmul.f32 %v277, %v158
    %v279 = vand.u32 2147483647, %v158
    %vm280 = vcmp.lt.f32.partialorder %v279, 0.0004427343
    %v281 = vsel %vm280, %v278, %v275
    %v282 = vadd.f32 %v160, 1.0
    %v283 = vlog2.pop %v282
    %v284 = vmul.f32 %v283, 0.6931472
    %v285 = vmul.f32 -0.5, %v160
    %v286 = vadd.f32 %v285, 1.0
    %v287 = vmul.f32 %v286, %v160
    %v288 = vand.u32 2147483647, %v160
    %vm289 = vcmp.lt.f32.partialorder %v288, 0.0004427343
    %v290 = vsel %vm289, %v287, %v284
    %v291 = vadd.f32 %v162, 1.0
    %v292 = vlog2.pop %v291
    %v293 = vmul.f32 %v292, 0.6931472
    %v294 = vmul.f32 -0.5, %v162
    %v295 = vadd.f32 %v294, 1.0
    %v296 = vmul.f32 %v295, %v162
    %v297 = vand.u32 2147483647, %v162
    %vm298 = vcmp.lt.f32.partialorder %v297, 0.0004427343
    %v299 = vsel %vm298, %v296, %v293
    %v300 = vadd.f32 %v164, 1.0
    %v301 = vlog2.pop %v300
    %v302 = vmul.f32 %v301, 0.6931472
    %v303 = vmul.f32 -0.5, %v164
    %v304 = vadd.f32 %v303, 1.0
    %v305 = vmul.f32 %v304, %v164
    %v306 = vand.u32 2147483647, %v164
    %vm307 = vcmp.lt.f32.partialorder %v306, 0.0004427343
    %v308 = vsel %vm307, %v305, %v302
    %v309 = vsel %vm101, %v85, %v173
    %v310 = vsel %vm102, %v86, %v182
    %v311 = vsel %vm103, %v87, %v191
    %v312 = vsel %vm104, %v88, %v200
    %v313 = vsel %vm105, %v89, %v209
    %v314 = vsel %vm106, %v90, %v218
    %v315 = vsel %vm107, %v91, %v227
    %v316 = vsel %vm108, %v92, %v236
    %v317 = vsel %vm109, %v93, %v245
    %v318 = vsel %vm110, %v94, %v254
    %v319 = vsel %vm111, %v95, %v263
    %v320 = vsel %vm112, %v96, %v272
    %v321 = vsel %vm113, %v97, %v281
    %v322 = vsel %vm114, %v98, %v290
    %v323 = vsel %vm115, %v99, %v299
    %v324 = vsel %vm116, %v100, %v308
    %v325 = vld [vmem:[#allocation6] sm:$0xff]
    %v326 = vld [vmem:[#allocation6 + $0x8] sm:$0xff]
    %v327 = vld [vmem:[#allocation6 + $0x10] sm:$0xff]
    %v328 = vld [vmem:[#allocation6 + $0x18] sm:$0xff]
    %v329 = vld [vmem:[#allocation6 + $0x20] sm:$0xff]
    %v330 = vld [vmem:[#allocation6 + $0x28] sm:$0xff]
    %v331 = vld [vmem:[#allocation6 + $0x30] sm:$0xff]
    %v332 = vld [vmem:[#allocation6 + $0x38] sm:$0xff]
    %v333 = vld [vmem:[#allocation6 + $0x40] sm:$0xff]
    %v334 = vld [vmem:[#allocation6 + $0x48] sm:$0xff]
    %v335 = vld [vmem:[#allocation6 + $0x50] sm:$0xff]
    %v336 = vld [vmem:[#allocation6 + $0x58] sm:$0xff]
    %v337 = vld [vmem:[#allocation6 + $0x60] sm:$0xff]
    %v338 = vld [vmem:[#allocation6 + $0x68] sm:$0xff]
    %v339 = vld [vmem:[#allocation6 + $0x70] sm:$0xff]
    %v340 = vld [vmem:[#allocation6 + $0x78] sm:$0xff]
    %v341 = vld [vmem:[#allocation9] sm:$0xff]
    %v342 = vld [vmem:[#allocation9 + $0x8] sm:$0xff]
    %v343 = vld [vmem:[#allocation9 + $0x10] sm:$0xff]
    %v344 = vld [vmem:[#allocation9 + $0x18] sm:$0xff]
    %v345 = vld [vmem:[#allocation9 + $0x20] sm:$0xff]
    %v346 = vld [vmem:[#allocation9 + $0x28] sm:$0xff]
    %v347 = vld [vmem:[#allocation9 + $0x30] sm:$0xff]
    %v348 = vld [vmem:[#allocation9 + $0x38] sm:$0xff]
    %v349 = vld [vmem:[#allocation9 + $0x40] sm:$0xff]
    %v350 = vld [vmem:[#allocation9 + $0x48] sm:$0xff]
    %v351 = vld [vmem:[#allocation9 + $0x50] sm:$0xff]
    %v352 = vld [vmem:[#allocation9 + $0x58] sm:$0xff]
    %v353 = vld [vmem:[#allocation9 + $0x60] sm:$0xff]
    %v354 = vld [vmem:[#allocation9 + $0x68] sm:$0xff]
    %v355 = vld [vmem:[#allocation9 + $0x70] sm:$0xff]
    %v356 = vld [vmem:[#allocation9 + $0x78] sm:$0xff]
    %v357 = vmul.f32 %v309, %v341
    %v358 = vmul.f32 %v310, %v342
    %v359 = vmul.f32 %v311, %v343
    %v360 = vmul.f32 %v312, %v344
    %v361 = vmul.f32 %v313, %v345
    %v362 = vmul.f32 %v314, %v346
    %v363 = vmul.f32 %v315, %v347
    %v364 = vmul.f32 %v316, %v348
    %v365 = vmul.f32 %v317, %v349
    %v366 = vmul.f32 %v318, %v350
    %v367 = vmul.f32 %v319, %v351
    %v368 = vmul.f32 %v320, %v352
    %v369 = vmul.f32 %v321, %v353
    %v370 = vmul.f32 %v322, %v354
    %v371 = vmul.f32 %v323, %v355
    %v372 = vmul.f32 %v324, %v356
    %v373 = vadd.f32 %v325, %v357
    %v374 = vadd.f32 %v326, %v358
    %v375 = vadd.f32 %v327, %v359
    %v376 = vadd.f32 %v328, %v360
    %v377 = vadd.f32 %v329, %v361
    %v378 = vadd.f32 %v330, %v362
    %v379 = vadd.f32 %v331, %v363
    %v380 = vadd.f32 %v332, %v364
    %v381 = vadd.f32 %v333, %v365
    %v382 = vadd.f32 %v334, %v366
    %v383 = vadd.f32 %v335, %v367
    %v384 = vadd.f32 %v336, %v368
    %v385 = vadd.f32 %v337, %v369
    %v386 = vadd.f32 %v338, %v370
    %v387 = vadd.f32 %v339, %v371
    %v388 = vadd.f32 %v340, %v372
    %v389 = vld [vmem:[#allocation2] sm:$0xff]
    %v390 = vld [vmem:[#allocation3] sm:$0xff]
    %391 = vmatprep.subr.mxu0 0.0
    %392 = vmatpush1.xpose.msra.mxu0 %v388
    %393 = vmatprep.subr.mxu0 0.0
    %394 = vmatpush1.xpose.msra.mxu0 %v387
    %395 = vmatprep.subr.mxu0 0.0
    %396 = vmatpush1.xpose.msra.mxu0 %v386
    %397 = vmatprep.subr.mxu0 0.0
    %398 = vmatpush1.xpose.msra.mxu0 %v385
    %399 = vmatprep.subr.mxu0 0.0
    %400 = vmatpush1.xpose.msra.mxu0 %v384
    %401 = vmatprep.subr.mxu0 0.0
    %402 = vmatpush1.xpose.msra.mxu0 %v383
    %403 = vmatprep.subr.mxu0 0.0
    %404 = vmatpush1.xpose.msra.mxu0 %v382
    %405 = vmatprep.subr.mxu0 0.0
    %406 = vmatpush1.xpose.msra.mxu0 %v381
    %407 = vmatprep.subr.mxu0 0.0
    %408 = vmatpush1.xpose.msra.mxu0 %v380
    %409 = vmatprep.subr.mxu0 0.0
    %410 = vmatpush1.xpose.msra.mxu0 %v379
    %411 = vmatprep.subr.mxu0 0.0
    %412 = vmatpush1.xpose.msra.mxu0 %v378
    %413 = vmatprep.subr.mxu0 0.0
    %414 = vmatpush1.xpose.msra.mxu0 %v377
    %415 = vmatprep.subr.mxu0 0.0
    %416 = vmatpush1.xpose.msra.mxu0 %v376
    %417 = vmatprep.subr.mxu0 0.0
    %418 = vmatpush1.xpose.msra.mxu0 %v375
    %419 = vmatprep.subr.mxu0 0.0
    %420 = vmatpush1.xpose.msra.mxu0 %v374
    %421 = vmatprep.subr.mxu0 0.0
    %422 = vmatpush1.xpose.msra.mxu0 %v373
    %423 = vmatprep.subr.mxu0 0.0
    %424 = vmatpush2.xpose.msra.mxu0 0.0
    %425 = vmatprep.subr.mxu0 0.0
    %426 = vmatpush2.xpose.msra.mxu0 0.0
    %427 = vmatprep.subr.mxu0 0.0
    %428 = vmatpush2.xpose.msra.mxu0 0.0
    %429 = vmatprep.subr.mxu0 0.0
    %430 = vmatpush2.xpose.msra.mxu0 0.0
    %431 = vmatprep.subr.mxu0 0.0
    %432 = vmatpush2.xpose.msra.mxu0 0.0
    %433 = vmatprep.subr.mxu0 0.0
    %434 = vmatpush2.xpose.msra.mxu0 0.0
    %435 = vmatprep.subr.mxu0 0.0
    %436 = vmatpush2.xpose.msra.mxu0 0.0
    %437 = vmatprep.subr.mxu0 0.0
    %438 = vmatpush2.xpose.msra.mxu0 0.0
    %439 = vmatprep.subr.mxu0 0.0
    %440 = vmatpush2.xpose.msra.mxu0 0.0
    %441 = vmatprep.subr.mxu0 0.0
    %442 = vmatpush2.xpose.msra.mxu0 0.0
    %443 = vmatprep.subr.mxu0 0.0
    %444 = vmatpush2.xpose.msra.mxu0 0.0
    %445 = vmatprep.subr.mxu0 0.0
    %446 = vmatpush2.xpose.msra.mxu0 0.0
    %447 = vmatprep.subr.mxu0 0.0
    %448 = vmatpush2.xpose.msra.mxu0 0.0
    %449 = vmatprep.subr.mxu0 0.0
    %450 = vmatpush2.xpose.msra.mxu0 0.0
    %451 = vmatprep.subr.mxu0 0.0
    %452 = vmatpush2.xpose.msra.mxu0 0.0
    %453 = vmatprep.subr.mxu0 0.0
    %454 = vmatpush2.xpose.msra.mxu0 0.0
    %455 = vmatprep.mubr.f32.mxu0 0.0
    %456 = vmatmul.mubr.f32.gmra.mxu0 %v390
    %v457 = vpop.f32.mrf.mxu0
    %v458 = vadd.f32 0.0, %v457
    %v459 = vpop.f32.mrf.mxu0
    %460 = vdwg.mxu0
    %v461 = vadd.f32 %v389, %v458
    %462 = vst [vmem:[#allocation2] sm:$0xff] %v461
    // Predicated region
    $region50: #{tpu_custom_call.1} parent=1 // pred_check
      %p463 = pneg %p80
    $region51: #{tpu_custom_call.1} parent=1 // pred_check_branch
      %465 = sbr.rel (%p463) target = $region53
    $region52: #{tpu_custom_call.1} parent=1 // pred_region
      %v466 = vld [vmem:[%s5] sm:$0x1]
      %vm467 = vcmp.gt.f32.partialorder %v466, 20.0
      %v468 = vmin.f32 %v466, 20.0
      %v469 = vmul.f32 %v468, 1.442695
      %v470 = vpow.pop %v469
      %v471 = vadd.f32 %v470, 1.0
      %v472 = vlog2.pop %v471
      %v473 = vmul.f32 %v472, 0.6931472
      %v474 = vmul.f32 -0.5, %v470
      %v475 = vadd.f32 %v474, 1.0
      %v476 = vmul.f32 %v475, %v470
      %v477 = vand.u32 2147483647, %v470
      %vm478 = vcmp.lt.f32.partialorder %v477, 0.0004427343
      %v479 = vsel %vm478, %v476, %v473
      %v480 = vsel %vm467, %v466, %v479
      %v481 = vld [vmem:[%s4] sm:$0x1]
      %v482 = vld [vmem:[%s6] sm:$0x1]
      %v483 = vmul.f32 %v480, %v482
      %v484 = vadd.f32 %v481, %v483
      %v485 = vld [vmem:[#allocation2] sm:$0xff]
      %v487 = vlaneseq
      %v488 = vshrl.u32 %v487, 7
      %v489 = vsub.s32 0, %v488
      %v490 = vrot.slane %v484, %v489
      %v492 = vadd.f32 %v485, %v490
      %493 = vst [vmem:[#allocation11] sm:$0xff] %v492
    $region53: #{tpu_custom_call.1} parent=1 // pred_fallthru
      _
    // Predicated region
    $region54: #{tpu_custom_call.1} parent=1 // pred_check
      _
    $region55: #{tpu_custom_call.1} parent=1 // pred_check_branch
      %495 = sbr.rel (0) target = $region57
    $region56: #{tpu_custom_call.1} parent=1 // pred_region
      %s497 = ssub.s32 128, 128
      %498 = vsyncadd [#allocation5], %s497
      %s500 = sshll.u32 [#allocation11], 4
      %s501 = int_to_ptr.vmem [resolvable:$true] %s500
      %503 = dma.vmem_to_hbm [thread:$0]  %s501, 128, %s7, [#allocation5]
    $region57: #{tpu_custom_call.1} parent=1 // pred_fallthru
      _
    // Predicated region
    $region58: #{tpu_custom_call.1} parent=1 // pred_check
      _
    $region59: #{tpu_custom_call.1} parent=1 // pred_check_branch
      %505 = sbr.rel (0) target = $region61
    $region60: #{tpu_custom_call.1} parent=1 // pred_region
      %506 = dma.done [#allocation5], 128
    $region61: #{tpu_custom_call.1} parent=1 // pred_fallthru
      _
    %507 = vsyncpa [#allocation4], 1
    %508 = vsyncpa [#allocation7], 1
    %509 = vsyncpa [#allocation10], 1
    %510 = vsyncpa [#allocation5], 1

</llo_original>
